<compile_context>
chip_gen: v7x
topology: tpu7x:2x2x1
jax: 0.10.0
libtpu: 0.0.40
codegen_flags: <defaults>
</compile_context>

<pallas_src>
import math

import jax
import jax.numpy as jnp
from jax import lax
from jax.experimental import pallas as pl
from jax.experimental.pallas import tpu as pltpu


_COMPILER_PARAMS = pltpu.CompilerParams(dimension_semantics=("arbitrary",))


# ------------------------- shared kernel epilogue --------------------------- #

def _softmax_weighted_store(logits_rep, xflat_ref, out_ref):
    """Block-diagonal softmax (with /seq_len folded in) + one 2-D MXU weighted sum.

    logits_rep : (B, B*S) fp32; row b holds B identical copies of logits[b, :]
                 (a consequence of the column-replicated weights — no in-kernel
                 tile/reshape is needed to reach this layout).
    xflat_ref  : (B*S, D) inputs with batch collapsed into sublanes (wrapper-side).
    out_ref    : (1, B*D) lane-dense output row.
    """
    B, BS = logits_rep.shape
    S = BS // B
    xf = xflat_ref[...]                                    # (B*S, D)

    # Block-diagonal mask, no integer division: col in [b*S, (b+1)*S).
    row = lax.broadcasted_iota(jnp.int32, (B, BS), 0)
    col = lax.broadcasted_iota(jnp.int32, (B, BS), 1)
    lo = row * S
    mask = (col >= lo) & (col < lo + S)

    # Row max over the replicated row == per-batch max (each row is B copies of
    # the same S logits), so no -inf masking is needed for the max.
    m = jnp.max(logits_rep, axis=-1, keepdims=True)        # (B, 1)
    e = jnp.where(mask, jnp.exp(logits_rep - m), 0.0)      # (B, B*S) block-diagonal
    # Fold softmax normalization and the /seq_len scale into one reciprocal.
    inv = pl.reciprocal(jnp.sum(e, axis=-1, keepdims=True) * float(S), approx=False)
    p_bd = (e * inv).astype(xf.dtype)                      # block-diag softmax / S

    # Single 2-D MXU matmul: (B, B*S) @ (B*S, D) -> (B, D).
    weighted = jnp.dot(p_bd, xf, preferred_element_type=jnp.float32)

    # Lane-dense store: assemble one contiguous (1, B*D) row (rotary-style lane
    # concat of the B rows) so the store is one unmasked full-width vst.
    row_out = jnp.concatenate([weighted[b:b + 1, :] for b in range(B)], axis=1)
    out_ref[...] = row_out.astype(out_ref.dtype)


# ------------------------------- kernels ----------------------------------- #

def _basic_attn_kernel(emb_ref, hid_ref, we_ref, wh_ref, xflat_ref, out_ref):
    # emb: (B, E); hid: (L, B, H); we: (E, B*S); wh: (L, H, B*S);
    # xflat: (B*S, D); out: (1, B*D).  Plain (1,0) contractions only.
    logits = jnp.dot(emb_ref[...], we_ref[...], preferred_element_type=jnp.float32)
    L = hid_ref.shape[0]
    for i in range(L):                           # L is a static Python constant
        logits = logits + jnp.dot(hid_ref[i], wh_ref[i],
                                  preferred_element_type=jnp.float32)
    _softmax_weighted_store(logits, xflat_ref, out_ref)


def _soft_attn_kernel(hid_ref, w13_ref, b3_ref, xflat_ref, out_ref):
    # hid: (B, H); w13: (H, B*S); b3: (1, B*S); xflat: (B*S, D); out: (1, B*D).
    logits = jnp.dot(hid_ref[...], w13_ref[...],
                     preferred_element_type=jnp.float32) + b3_ref[...]
    _softmax_weighted_store(logits, xflat_ref, out_ref)


# --------------------- one-time parameter transformations ------------------- #

def prepare_basic_params(fc_weight, embedding_size, hidden_size, n_layers_dirs, batch_size):
    """Split nn.Linear's (S, E + L*H) weight into per-source blocks, transpose to
    plain (in, out) contraction layout, and replicate the S output columns B times
    so in-kernel logits land directly in the (B, B*S) replicated layout."""
    E, H, L, B = embedding_size, hidden_size, n_layers_dirs, batch_size
    w_e = jnp.transpose(fc_weight[:, :E])                                   # (E, S)
    w_h = jnp.stack([jnp.transpose(fc_weight[:, E + i * H: E + (i + 1) * H])
                     for i in range(L)])                                    # (L, H, S)
    return jnp.tile(w_e, (1, B)), jnp.tile(w_h, (1, 1, B))                  # (E,B*S), (L,H,B*S)


def prepare_soft_params(W1, b, W3, batch_size):
    """(h @ W1 + b) @ W3 == h @ (W1 @ W3) + (b @ W3): fold once, then replicate columns."""
    B = batch_size
    W13 = jnp.dot(W1, W3, preferred_element_type=jnp.float32).astype(W1.dtype)           # (H, S)
    b3 = jnp.dot(b.reshape(1, -1), W3, preferred_element_type=jnp.float32).astype(W1.dtype)  # (1, S)
    return jnp.tile(W13, (1, B)), jnp.tile(b3, (1, B))                      # (H,B*S), (1,B*S)


# ------------------------------- wrappers ----------------------------------- #

def _full_specs(*arrays):
    # Everything is tiny: load each operand whole into VMEM (block == array, grid=(1,)).
    return [pl.BlockSpec(a.shape, lambda i, nd=a.ndim: (0,) * nd) for a in arrays]


def _attn_call(kernel, args, B, D, out_dtype):
    row = pl.pallas_call(
        kernel,
        out_shape=jax.ShapeDtypeStruct((1, B * D), out_dtype),
        grid=(1,),
        in_specs=_full_specs(*args),
        out_specs=pl.BlockSpec((1, B * D), lambda i: (0, 0)),
        compiler_params=_COMPILER_PARAMS,
    )(*args)
    return row.reshape(B, D)        # lane-dense (1, B*D) slab -> (B, D)


@jax.jit
def attention_basic(inputs, hiddens, embeddings, we_rep, wh_rep):
    """'basic' mode forward pass (the torch.cat glue is fused into the kernel)."""
    B, S, D = inputs.shape
    xflat = inputs.reshape(B * S, D)          # free wrapper-side reshape (batch -> sublanes)
    return _attn_call(_basic_attn_kernel,
                      (embeddings, hiddens, we_rep, wh_rep, xflat), B, D, inputs.dtype)


@jax.jit
def attention_soft(inputs, hiddens, w13_rep, b3_rep):
    """'soft' mode forward pass (W1/W3/b pre-folded once in prepare_soft_params)."""
    B, S, D = inputs.shape
    xflat = inputs.reshape(B * S, D)
    return _attn_call(_soft_attn_kernel,
                      (hiddens, w13_rep, b3_rep, xflat), B, D, inputs.dtype)


# --------------------------- pure-JAX references ---------------------------- #

def _ref_basic(inputs, hiddens, embeddings, fc_weight):
    L = hiddens.shape[0]
    h_cat = jnp.concatenate([hiddens[i] for i in range(L)], axis=1)
    concat = jnp.concatenate([embeddings, h_cat], axis=1)
    attn = jax.nn.softmax(concat @ fc_weight.T, axis=1)
    return jnp.einsum("bs,bsd->bd", attn, inputs) / inputs.shape[1]


def _ref_soft(inputs, hiddens, W1, b, W3):
    attn = jax.nn.softmax((hiddens @ W1 + b) @ W3, axis=1)
    return jnp.einsum("bs,bsd->bd", attn, inputs) / inputs.shape[1]


# --------------------------------- main ------------------------------------- #

if __name__ == "__main__":
    # module hyper-params
    seq_len = 8
    embedding_size = 16
    hidden_size = 32
    n_layers = 1
    num_directions = 2
    B = 2
    D = num_directions * hidden_size                      # 64
    L = n_layers * num_directions                         # 2
    F = embedding_size + hidden_size * L                  # fc in_features = 80

    key = jax.random.PRNGKey(0)
    k_in, k_hid, k_emb, k_fc, k_w1, k_w3, k_hsoft = jax.random.split(key, 7)

    # inputs / activations
    inputs = jax.random.normal(k_in, (B, seq_len, D), dtype=jnp.float32)
    hiddens = jax.random.normal(k_hid, (L, B, hidden_size), dtype=jnp.float32)
    embeddings = jax.random.normal(k_emb, (B, embedding_size), dtype=jnp.float32)

    # parameters ('basic' mode): nn.Linear(F, seq_len, bias=False), xavier_normal_
    xavier_std = math.sqrt(2.0 / (F + seq_len))
    fc_weight = xavier_std * jax.random.normal(k_fc, (seq_len, F), dtype=jnp.float32)

    # parameters ('soft' mode): W1 (H,H), W3 (H,S), b zeros(H)
    W1 = 0.1 * jax.random.normal(k_w1, (hidden_size, hidden_size), dtype=jnp.float32)
    W3 = 0.1 * jax.random.normal(k_w3, (hidden_size, seq_len), dtype=jnp.float32)
    b = jnp.zeros((hidden_size,), dtype=jnp.float32)
    hiddens_soft = jax.random.normal(k_hsoft, (B, hidden_size), dtype=jnp.float32)

    # one-time parameter prep (split / transpose / replicate / fold)
    we_rep, wh_rep = prepare_basic_params(fc_weight, embedding_size, hidden_size, L, B)
    w13_rep, b3_rep = prepare_soft_params(W1, b, W3, B)

    # run kernels
    out_basic = jax.block_until_ready(
        attention_basic(inputs, hiddens, embeddings, we_rep, wh_rep))
    out_soft = jax.block_until_ready(
        attention_soft(inputs, hiddens_soft, w13_rep, b3_rep))

    # correctness vs pure-JAX reference
    ref_basic = _ref_basic(inputs, hiddens, embeddings, fc_weight)
    ref_soft = _ref_soft(inputs, hiddens_soft, W1, b, W3)
    assert out_basic.shape == (B, D) and out_soft.shape == (B, D)
    assert jnp.allclose(out_basic, ref_basic, atol=1e-5, rtol=1e-5)
    assert jnp.allclose(out_soft, ref_soft, atol=1e-5, rtol=1e-5)

    print("KERNEL_OK")
</pallas_src>

<mosaic_0001>
module attributes {stable_mosaic.version = 11 : i64} {
  func.func @_basic_attn_kernel(%arg0: i32, %arg1: memref<2x16xf32, #tpu.memory_space<vmem>>, %arg2: memref<2x2x32xf32, #tpu.memory_space<vmem>>, %arg3: memref<16x16xf32, #tpu.memory_space<vmem>>, %arg4: memref<2x32x16xf32, #tpu.memory_space<vmem>>, %arg5: memref<16x64xf32, #tpu.memory_space<vmem>>, %arg6: memref<1x128xf32, #tpu.memory_space<vmem>>) attributes {dimension_semantics = [#tpu.dimension_semantics<arbitrary>], iteration_bounds = array<i64: 1>, scalar_prefetch = 0 : i64, scratch_operands = 0 : i64, tpu.core_type = #tpu.core_type<tc>, window_params = [{pipeline_mode = #tpu.pipeline_mode<synchronous>, transform_indices = @transform_0, window_bounds = array<i64: 2, 16>}, {pipeline_mode = #tpu.pipeline_mode<synchronous>, transform_indices = @transform_1, window_bounds = array<i64: 2, 2, 32>}, {pipeline_mode = #tpu.pipeline_mode<synchronous>, transform_indices = @transform_2, window_bounds = array<i64: 16, 16>}, {pipeline_mode = #tpu.pipeline_mode<synchronous>, transform_indices = @transform_3, window_bounds = array<i64: 2, 32, 16>}, {pipeline_mode = #tpu.pipeline_mode<synchronous>, transform_indices = @transform_4, window_bounds = array<i64: 16, 64>}, {pipeline_mode = #tpu.pipeline_mode<synchronous>, transform_indices = @transform_5, window_bounds = array<i64: 1, 128>}]} {
    %c0 = arith.constant 0 : index
    %c0_0 = arith.constant 0 : index
    %0 = vector.load %arg1[%c0, %c0_0] : memref<2x16xf32, #tpu.memory_space<vmem>>, vector<2x16xf32>
    %c0_1 = arith.constant 0 : index
    %c0_2 = arith.constant 0 : index
    %1 = vector.load %arg3[%c0_1, %c0_2] : memref<16x16xf32, #tpu.memory_space<vmem>>, vector<16x16xf32>
    %cst = arith.constant dense<0.000000e+00> : vector<2x16xf32>
    %2 = tpu.matmul %0, %1, %cst {dimension_numbers = #tpu.dot_dimension_numbers<[1], [0], [0], [1], [0, 0, 1, 1], [], []>} : vector<2x16xf32>, vector<16x16xf32>, vector<2x16xf32> -> vector<2x16xf32>
    %c0_3 = arith.constant 0 : index
    %c0_4 = arith.constant 0 : index
    %c0_5 = arith.constant 0 : index
    %3 = vector.load %arg2[%c0_3, %c0_4, %c0_5] : memref<2x2x32xf32, #tpu.memory_space<vmem>>, vector<1x2x32xf32>
    %4 = vector.shape_cast %3 : vector<1x2x32xf32> to vector<2x32xf32>
    %c0_6 = arith.constant 0 : index
    %c0_7 = arith.constant 0 : index
    %c0_8 = arith.constant 0 : index
    %5 = vector.load %arg4[%c0_6, %c0_7, %c0_8] : memref<2x32x16xf32, #tpu.memory_space<vmem>>, vector<1x32x16xf32>
    %6 = vector.shape_cast %5 : vector<1x32x16xf32> to vector<32x16xf32>
    %cst_9 = arith.constant dense<0.000000e+00> : vector<2x16xf32>
    %7 = tpu.matmul %4, %6, %cst_9 {dimension_numbers = #tpu.dot_dimension_numbers<[1], [0], [0], [1], [0, 0, 1, 1], [], []>} : vector<2x32xf32>, vector<32x16xf32>, vector<2x16xf32> -> vector<2x16xf32>
    %8 = arith.addf %2, %7 : vector<2x16xf32>
    %c1 = arith.constant 1 : index
    %c0_10 = arith.constant 0 : index
    %c0_11 = arith.constant 0 : index
    %9 = vector.load %arg2[%c1, %c0_10, %c0_11] : memref<2x2x32xf32, #tpu.memory_space<vmem>>, vector<1x2x32xf32>
    %10 = vector.shape_cast %9 : vector<1x2x32xf32> to vector<2x32xf32>
    %c1_12 = arith.constant 1 : index
    %c0_13 = arith.constant 0 : index
    %c0_14 = arith.constant 0 : index
    %11 = vector.load %arg4[%c1_12, %c0_13, %c0_14] : memref<2x32x16xf32, #tpu.memory_space<vmem>>, vector<1x32x16xf32>
    %12 = vector.shape_cast %11 : vector<1x32x16xf32> to vector<32x16xf32>
    %cst_15 = arith.constant dense<0.000000e+00> : vector<2x16xf32>
    %13 = tpu.matmul %10, %12, %cst_15 {dimension_numbers = #tpu.dot_dimension_numbers<[1], [0], [0], [1], [0, 0, 1, 1], [], []>} : vector<2x32xf32>, vector<32x16xf32>, vector<2x16xf32> -> vector<2x16xf32>
    %14 = arith.addf %8, %13 : vector<2x16xf32>
    %c0_16 = arith.constant 0 : index
    %c0_17 = arith.constant 0 : index
    %15 = vector.load %arg5[%c0_16, %c0_17] : memref<16x64xf32, #tpu.memory_space<vmem>>, vector<16x64xf32>
    %16 = tpu.iota {dimensions = array<i32: 0>} : vector<2x16xi32>
    %17 = tpu.iota {dimensions = array<i32: 1>} : vector<2x16xi32>
    %c8_i32 = arith.constant 8 : i32
    %18 = vector.broadcast %c8_i32 : i32 to vector<2x16xi32>
    %19 = arith.muli %16, %18 : vector<2x16xi32>
    %20 = arith.cmpi sge, %17, %19 : vector<2x16xi32>
    %c8_i32_18 = arith.constant 8 : i32
    %21 = vector.broadcast %c8_i32_18 : i32 to vector<2x16xi32>
    %22 = arith.addi %19, %21 : vector<2x16xi32>
    %23 = arith.cmpi slt, %17, %22 : vector<2x16xi32>
    %24 = arith.andi %20, %23 : vector<2x16xi1>
    %cst_19 = arith.constant dense<0xFF800000> : vector<2xf32>
    %25 = vector.multi_reduction <maximumf>, %14, %cst_19 [1] : vector<2x16xf32> to vector<2xf32>
    %26 = vector.shape_cast %25 : vector<2xf32> to vector<2x1xf32>
    %27 = vector.broadcast %26 : vector<2x1xf32> to vector<2x16xf32>
    %28 = arith.subf %14, %27 : vector<2x16xf32>
    %29 = math.exp %28 : vector<2x16xf32>
    %cst_20 = arith.constant 0.000000e+00 : f32
    %30 = vector.broadcast %cst_20 : f32 to vector<2x16xf32>
    %31 = arith.select %24, %29, %30 : vector<2x16xi1>, vector<2x16xf32>
    %cst_21 = arith.constant dense<0.000000e+00> : vector<2xf32>
    %32 = vector.multi_reduction <add>, %31, %cst_21 [1] : vector<2x16xf32> to vector<2xf32>
    %33 = vector.shape_cast %32 : vector<2xf32> to vector<2x1xf32>
    %cst_22 = arith.constant 8.000000e+00 : f32
    %34 = vector.broadcast %cst_22 : f32 to vector<2x1xf32>
    %35 = arith.mulf %33, %34 : vector<2x1xf32>
    %36 = tpu.reciprocal %35 : vector<2x1xf32> -> vector<2x1xf32>
    %37 = vector.broadcast %36 : vector<2x1xf32> to vector<2x16xf32>
    %38 = arith.mulf %31, %37 : vector<2x16xf32>
    %cst_23 = arith.constant dense<0.000000e+00> : vector<2x64xf32>
    %39 = tpu.matmul %38, %15, %cst_23 {dimension_numbers = #tpu.dot_dimension_numbers<[1], [0], [0], [1], [0, 0, 1, 1], [], []>} : vector<2x16xf32>, vector<16x64xf32>, vector<2x64xf32> -> vector<2x64xf32>
    %40 = vector.extract_strided_slice %39 {offsets = [0, 0], sizes = [1, 64], strides = [1, 1]} : vector<2x64xf32> to vector<1x64xf32>
    %41 = vector.extract_strided_slice %39 {offsets = [1, 0], sizes = [1, 64], strides = [1, 1]} : vector<2x64xf32> to vector<1x64xf32>
    %42 = tpu.concatenate %40, %41 in 1 : vector<1x64xf32>, vector<1x64xf32> -> vector<1x128xf32>
    %c0_24 = arith.constant 0 : index
    %c0_25 = arith.constant 0 : index
    %43 = vector.load %arg6[%c0_24, %c0_25] : memref<1x128xf32, #tpu.memory_space<vmem>>, vector<1x128xf32>
    tpu.vector_store %arg6[%c0_24, %c0_25], %42 {strides = array<i32>} : memref<1x128xf32, #tpu.memory_space<vmem>>, vector<1x128xf32>,
    return
  }
  func.func @transform_0(%arg0: i32) -> (i32, i32) {
    %c0_i32 = arith.constant 0 : i32
    %c0_i32_0 = arith.constant 0 : i32
    %c0_i32_1 = arith.constant 0 : i32
    return %c0_i32, %c0_i32_0 : i32, i32
  }
  func.func @transform_1(%arg0: i32) -> (i32, i32, i32) {
    %c0_i32 = arith.constant 0 : i32
    %c0_i32_0 = arith.constant 0 : i32
    %c0_i32_1 = arith.constant 0 : i32
    %c0_i32_2 = arith.constant 0 : i32
    return %c0_i32, %c0_i32_0, %c0_i32_1 : i32, i32, i32
  }
  func.func @transform_2(%arg0: i32) -> (i32, i32) {
    %c0_i32 = arith.constant 0 : i32
    %c0_i32_0 = arith.constant 0 : i32
    %c0_i32_1 = arith.constant 0 : i32
    return %c0_i32, %c0_i32_0 : i32, i32
  }
  func.func @transform_3(%arg0: i32) -> (i32, i32, i32) {
    %c0_i32 = arith.constant 0 : i32
    %c0_i32_0 = arith.constant 0 : i32
    %c0_i32_1 = arith.constant 0 : i32
    %c0_i32_2 = arith.constant 0 : i32
    return %c0_i32, %c0_i32_0, %c0_i32_1 : i32, i32, i32
  }
  func.func @transform_4(%arg0: i32) -> (i32, i32) {
    %c0_i32 = arith.constant 0 : i32
    %c0_i32_0 = arith.constant 0 : i32
    %c0_i32_1 = arith.constant 0 : i32
    return %c0_i32, %c0_i32_0 : i32, i32
  }
  func.func @transform_5(%arg0: i32) -> (i32, i32) {
    %c0_i32 = arith.constant 0 : i32
    %c0_i32_0 = arith.constant 0 : i32
    %c0_i32_1 = arith.constant 0 : i32
    return %c0_i32, %c0_i32_0 : i32, i32
  }
}

</mosaic_0001>

<llo_original>
// kernel: attention_basic.1
$region0: #{attention_basic.1}
  #allocation0 [shape = 'u32[]', space=smem, size = 0x4, offset = 0x4, fixed_abs, tag = 'smem constant byte address 0x4 - core index']
  #allocation1 [shape = 'u32[144,128]{1,0:T(1,128)}', space=vmem, size = 0x12000, scoped, tag = 'internal scratch']
  %s0 = inlined_call_operand.vmem [shape: f32[2,16], index: 0, kind: input, shape index: {}]
  %s1 = inlined_call_operand.vmem [shape: f32[2,2,32], index: 1, kind: input, shape index: {}]
  %s2 = inlined_call_operand.vmem [shape: f32[16,16], index: 2, kind: input, shape index: {}]
  %s3 = inlined_call_operand.vmem [shape: f32[2,32,16], index: 3, kind: input, shape index: {}]
  %s4 = inlined_call_operand.vmem [shape: f32[16,64], index: 4, kind: input, shape index: {}]
  %s5 = inlined_call_operand.vmem [shape: f32[1,128], index: 5, kind: output, shape index: {}]
  %s6 = sld [smem:[#allocation0]]
  $region30: #{attention_basic.1} parent=0
    _
  %s8 = ssub.s32 1, %s6
  %s9 = scalar_select 0, %s8, %s6
  // Predicated region
  $region2: #{attention_basic.1} parent=0 // pred_check
    _
  $region3: #{attention_basic.1} parent=0 // pred_check_branch
    %11 = sbr.rel (0) target = $region5
  $region4: #{attention_basic.1} parent=0 // pred_region
    _
  $region5: #{attention_basic.1} parent=0 // pred_fallthru
    _
  // Predicated region
  $region6: #{attention_basic.1} parent=0 // pred_check
    _
  $region7: #{attention_basic.1} parent=0 // pred_check_branch
    %13 = sbr.rel (0) target = $region9
  $region8: #{attention_basic.1} parent=0 // pred_region
    _
  $region9: #{attention_basic.1} parent=0 // pred_fallthru
    _
  // Predicated region
  $region10: #{attention_basic.1} parent=0 // pred_check
    _
  $region11: #{attention_basic.1} parent=0 // pred_check_branch
    %15 = sbr.rel (0) target = $region13
  $region12: #{attention_basic.1} parent=0 // pred_region
    _
  $region13: #{attention_basic.1} parent=0 // pred_fallthru
    _
  // Predicated region
  $region14: #{attention_basic.1} parent=0 // pred_check
    _
  $region15: #{attention_basic.1} parent=0 // pred_check_branch
    %17 = sbr.rel (0) target = $region17
  $region16: #{attention_basic.1} parent=0 // pred_region
    _
  $region17: #{attention_basic.1} parent=0 // pred_fallthru
    _
  // Predicated region
  $region18: #{attention_basic.1} parent=0 // pred_check
    _
  $region19: #{attention_basic.1} parent=0 // pred_check_branch
    %19 = sbr.rel (0) target = $region21
  $region20: #{attention_basic.1} parent=0 // pred_region
    _
  $region21: #{attention_basic.1} parent=0 // pred_fallthru
    _
  %v20 = vld [vmem:[%s0] sm:$0x3]
  %v21 = vld [vmem:[%s2] sm:$0xff]
  %v22 = vld [vmem:[%s2 + $0x8] sm:$0xff]
  %v23 = vld [vmem:[%s1] sm:$0x3]
  %v24 = vld [vmem:[%s3] sm:$0xff]
  %v25 = vld [vmem:[%s3 + $0x8] sm:$0xff]
  %v26 = vld [vmem:[%s3 + $0x10] sm:$0xff]
  %v27 = vld [vmem:[%s3 + $0x18] sm:$0xff]
  %vm28 = vcmask 261120
  %v30 = vsel %vm28, %v23, 0
  %32 = vmatprep.subr.mxu0 0.0
  %33 = vmatpush1.msra.mxu0 %v24
  %34 = vmatprep.subr.mxu0 0.0
  %35 = vmatpush1.msra.mxu0 %v25
  %36 = vmatprep.subr.mxu0 0.0
  %37 = vmatpush1.msra.mxu0 %v26
  %38 = vmatprep.subr.mxu0 0.0
  %39 = vmatpush1.msra.mxu0 %v27
  %40 = vmatprep.subr.mxu0 0.0
  %41 = vmatpush1.msra.mxu0 0.0
  %42 = vmatprep.subr.mxu0 0.0
  %43 = vmatpush1.msra.mxu0 0.0
  %44 = vmatprep.subr.mxu0 0.0
  %45 = vmatpush1.msra.mxu0 0.0
  %46 = vmatprep.subr.mxu0 0.0
  %47 = vmatpush1.msra.mxu0 0.0
  %48 = vmatprep.subr.mxu0 0.0
  %49 = vmatpush1.msra.mxu0 0.0
  %50 = vmatprep.subr.mxu0 0.0
  %51 = vmatpush1.msra.mxu0 0.0
  %52 = vmatprep.subr.mxu0 0.0
  %53 = vmatpush1.msra.mxu0 0.0
  %54 = vmatprep.subr.mxu0 0.0
  %55 = vmatpush1.msra.mxu0 0.0
  %56 = vmatprep.subr.mxu0 0.0
  %57 = vmatpush1.msra.mxu0 0.0
  %58 = vmatprep.subr.mxu0 0.0
  %59 = vmatpush1.msra.mxu0 0.0
  %60 = vmatprep.subr.mxu0 0.0
  %61 = vmatpush1.msra.mxu0 0.0
  %62 = vmatprep.subr.mxu0 0.0
  %63 = vmatpush1.msra.mxu0 0.0
  %64 = vmatprep.subr.mxu0 0.0
  %65 = vmatpush1.msra.mxu0 0.0
  %66 = vmatprep.subr.mxu0 0.0
  %67 = vmatpush1.msra.mxu0 0.0
  %68 = vmatprep.subr.mxu0 0.0
  %69 = vmatpush1.msra.mxu0 0.0
  %70 = vmatprep.subr.mxu0 0.0
  %71 = vmatpush1.msra.mxu0 0.0
  %72 = vmatprep.subr.mxu0 0.0
  %73 = vmatpush1.msra.mxu0 0.0
  %74 = vmatprep.subr.mxu0 0.0
  %75 = vmatpush1.msra.mxu0 0.0
  %76 = vmatprep.subr.mxu0 0.0
  %77 = vmatpush1.msra.mxu0 0.0
  %78 = vmatprep.subr.mxu0 0.0
  %79 = vmatpush1.msra.mxu0 0.0
  %80 = vmatprep.subr.mxu0 0.0
  %81 = vmatpush1.msra.mxu0 0.0
  %82 = vmatprep.subr.mxu0 0.0
  %83 = vmatpush1.msra.mxu0 0.0
  %84 = vmatprep.subr.mxu0 0.0
  %85 = vmatpush1.msra.mxu0 0.0
  %86 = vmatprep.subr.mxu0 0.0
  %87 = vmatpush1.msra.mxu0 0.0
  %88 = vmatprep.subr.mxu0 0.0
  %89 = vmatpush1.msra.mxu0 0.0
  %90 = vmatprep.subr.mxu0 0.0
  %91 = vmatpush1.msra.mxu0 0.0
  %92 = vmatprep.subr.mxu0 0.0
  %93 = vmatpush1.msra.mxu0 0.0
  %94 = vmatprep.subr.mxu0 0.0
  %95 = vmatpush1.msra.mxu0 0.0
  %96 = vmatprep.mubr.f32.mxu0 0.0
  %97 = vmatmul.mubr.f32.gmra.mrb[0].mxu0 %v30
  %v98 = vpop.f32.mrb[0].mxu0
  %v99 = vadd.f32 0.0, %v98
  %v100 = vpop.f32.mrb[0].mxu0
  %101 = vdwg.mxu0
  %vm102 = vcmask 130048
  %v104 = vsel %vm102, %v20, 0
  %106 = vmatprep.subr.mxu0 0.0
  %107 = vmatpush1.msra.mxu0 %v21
  %108 = vmatprep.subr.mxu0 0.0
  %109 = vmatpush1.msra.mxu0 %v22
  %110 = vmatprep.subr.mxu0 0.0
  %111 = vmatpush1.msra.mxu0 0.0
  %112 = vmatprep.subr.mxu0 0.0
  %113 = vmatpush1.msra.mxu0 0.0
  %114 = vmatprep.subr.mxu0 0.0
  %115 = vmatpush1.msra.mxu0 0.0
  %116 = vmatprep.subr.mxu0 0.0
  %117 = vmatpush1.msra.mxu0 0.0
  %118 = vmatprep.subr.mxu0 0.0
  %119 = vmatpush1.msra.mxu0 0.0
  %120 = vmatprep.subr.mxu0 0.0
  %121 = vmatpush1.msra.mxu0 0.0
  %122 = vmatprep.subr.mxu0 0.0
  %123 = vmatpush1.msra.mxu0 0.0
  %124 = vmatprep.subr.mxu0 0.0
  %125 = vmatpush1.msra.mxu0 0.0
  %126 = vmatprep.subr.mxu0 0.0
  %127 = vmatpush1.msra.mxu0 0.0
  %128 = vmatprep.subr.mxu0 0.0
  %129 = vmatpush1.msra.mxu0 0.0
  %130 = vmatprep.subr.mxu0 0.0
  %131 = vmatpush1.msra.mxu0 0.0
  %132 = vmatprep.subr.mxu0 0.0
  %133 = vmatpush1.msra.mxu0 0.0
  %134 = vmatprep.subr.mxu0 0.0
  %135 = vmatpush1.msra.mxu0 0.0
  %136 = vmatprep.subr.mxu0 0.0
  %137 = vmatpush1.msra.mxu0 0.0
  %138 = vmatprep.subr.mxu0 0.0
  %139 = vmatpush1.msra.mxu0 0.0
  %140 = vmatprep.subr.mxu0 0.0
  %141 = vmatpush1.msra.mxu0 0.0
  %142 = vmatprep.subr.mxu0 0.0
  %143 = vmatpush1.msra.mxu0 0.0
  %144 = vmatprep.subr.mxu0 0.0
  %145 = vmatpush1.msra.mxu0 0.0
  %146 = vmatprep.subr.mxu0 0.0
  %147 = vmatpush1.msra.mxu0 0.0
  %148 = vmatprep.subr.mxu0 0.0
  %149 = vmatpush1.msra.mxu0 0.0
  %150 = vmatprep.subr.mxu0 0.0
  %151 = vmatpush1.msra.mxu0 0.0
  %152 = vmatprep.subr.mxu0 0.0
  %153 = vmatpush1.msra.mxu0 0.0
  %154 = vmatprep.subr.mxu0 0.0
  %155 = vmatpush1.msra.mxu0 0.0
  %156 = vmatprep.subr.mxu0 0.0
  %157 = vmatpush1.msra.mxu0 0.0
  %158 = vmatprep.subr.mxu0 0.0
  %159 = vmatpush1.msra.mxu0 0.0
  %160 = vmatprep.subr.mxu0 0.0
  %161 = vmatpush1.msra.mxu0 0.0
  %162 = vmatprep.subr.mxu0 0.0
  %163 = vmatpush1.msra.mxu0 0.0
  %164 = vmatprep.subr.mxu0 0.0
  %165 = vmatpush1.msra.mxu0 0.0
  %166 = vmatprep.subr.mxu0 0.0
  %167 = vmatpush1.msra.mxu0 0.0
  %168 = vmatprep.subr.mxu0 0.0
  %169 = vmatpush1.msra.mxu0 0.0
  %170 = vmatprep.mubr.f32.mxu0 0.0
  %171 = vmatmul.mubr.f32.gmra.mrb[0].mxu0 %v104
  %v172 = vpop.f32.mrb[0].mxu0
  %v173 = vadd.f32 %v99, %v172
  %v174 = vpop.f32.mrb[0].mxu0
  %175 = vdwg.mxu0
  %s176 = scalar_lea.vmem %s1, 2
  %v177 = vld [vmem:[%s176] sm:$0x3]
  %s178 = scalar_lea.vmem %s3, 32
  %v179 = vld [vmem:[%s178] sm:$0xff]
  %v180 = vld [vmem:[%s178 + $0x8] sm:$0xff]
  %v181 = vld [vmem:[%s178 + $0x10] sm:$0xff]
  %v182 = vld [vmem:[%s178 + $0x18] sm:$0xff]
  %v184 = vsel %vm28, %v177, 0
  %186 = vmatprep.subr.mxu0 0.0
  %187 = vmatpush1.msra.mxu0 %v179
  %188 = vmatprep.subr.mxu0 0.0
  %189 = vmatpush1.msra.mxu0 %v180
  %190 = vmatprep.subr.mxu0 0.0
  %191 = vmatpush1.msra.mxu0 %v181
  %192 = vmatprep.subr.mxu0 0.0
  %193 = vmatpush1.msra.mxu0 %v182
  %194 = vmatprep.subr.mxu0 0.0
  %195 = vmatpush1.msra.mxu0 0.0
  %196 = vmatprep.subr.mxu0 0.0
  %197 = vmatpush1.msra.mxu0 0.0
  %198 = vmatprep.subr.mxu0 0.0
  %199 = vmatpush1.msra.mxu0 0.0
  %200 = vmatprep.subr.mxu0 0.0
  %201 = vmatpush1.msra.mxu0 0.0
  %202 = vmatprep.subr.mxu0 0.0
  %203 = vmatpush1.msra.mxu0 0.0
  %204 = vmatprep.subr.mxu0 0.0
  %205 = vmatpush1.msra.mxu0 0.0
  %206 = vmatprep.subr.mxu0 0.0
  %207 = vmatpush1.msra.mxu0 0.0
  %208 = vmatprep.subr.mxu0 0.0
  %209 = vmatpush1.msra.mxu0 0.0
  %210 = vmatprep.subr.mxu0 0.0
  %211 = vmatpush1.msra.mxu0 0.0
  %212 = vmatprep.subr.mxu0 0.0
  %213 = vmatpush1.msra.mxu0 0.0
  %214 = vmatprep.subr.mxu0 0.0
  %215 = vmatpush1.msra.mxu0 0.0
  %216 = vmatprep.subr.mxu0 0.0
  %217 = vmatpush1.msra.mxu0 0.0
  %218 = vmatprep.subr.mxu0 0.0
  %219 = vmatpush1.msra.mxu0 0.0
  %220 = vmatprep.subr.mxu0 0.0
  %221 = vmatpush1.msra.mxu0 0.0
  %222 = vmatprep.subr.mxu0 0.0
  %223 = vmatpush1.msra.mxu0 0.0
  %224 = vmatprep.subr.mxu0 0.0
  %225 = vmatpush1.msra.mxu0 0.0
  %226 = vmatprep.subr.mxu0 0.0
  %227 = vmatpush1.msra.mxu0 0.0
  %228 = vmatprep.subr.mxu0 0.0
  %229 = vmatpush1.msra.mxu0 0.0
  %230 = vmatprep.subr.mxu0 0.0
  %231 = vmatpush1.msra.mxu0 0.0
  %232 = vmatprep.subr.mxu0 0.0
  %233 = vmatpush1.msra.mxu0 0.0
  %234 = vmatprep.subr.mxu0 0.0
  %235 = vmatpush1.msra.mxu0 0.0
  %236 = vmatprep.subr.mxu0 0.0
  %237 = vmatpush1.msra.mxu0 0.0
  %238 = vmatprep.subr.mxu0 0.0
  %239 = vmatpush1.msra.mxu0 0.0
  %240 = vmatprep.subr.mxu0 0.0
  %241 = vmatpush1.msra.mxu0 0.0
  %242 = vmatprep.subr.mxu0 0.0
  %243 = vmatpush1.msra.mxu0 0.0
  %244 = vmatprep.subr.mxu0 0.0
  %245 = vmatpush1.msra.mxu0 0.0
  %246 = vmatprep.subr.mxu0 0.0
  %247 = vmatpush1.msra.mxu0 0.0
  %248 = vmatprep.subr.mxu0 0.0
  %249 = vmatpush1.msra.mxu0 0.0
  %250 = vmatprep.mubr.f32.mxu0 0.0
  %251 = vmatmul.mubr.f32.gmra.mrb[0].mxu0 %v184
  %v252 = vpop.f32.mrb[0].mxu0
  %v253 = vadd.f32 0.0, %v252
  %v254 = vpop.f32.mrb[0].mxu0
  %255 = vdwg.mxu0
  %v256 = vadd.f32 %v173, %v253
  %v257 = vld [vmem:[%s4] sm:$0xff]
  %v258 = vld [vmem:[%s4 + $0x8] sm:$0xff]
  %v259 = vlaneseq
  %v260 = vshrl.u32 %v259, 7
  %v261 = vlaneseq
  %v262 = vand.u32 %v261, 127
  %v263 = vmul.u32 %v260, 8
  %vm264 = vcmp.ge.s32.totalorder %v262, %v263
  %v265 = vadd.s32 %v263, 8
  %vm266 = vcmp.lt.s32.totalorder %v262, %v265
  %vm267 = vmand %vm264, %vm266
  %vm268 = vcmask 123904
  %v269 = vsel %vm268, %v256, -inf
  %270 = vmax.xlane.f32.xlu0 %v269
  %v271 = vpop.xlane.xlu0 %270
  %v272 = vsub.f32 %v256, %v271
  %v273 = vmul.f32 %v272, 1.442695
  %v274 = vpow.pop %v273
  %v275 = vsel %vm267, %v274, 0.0
  %v276 = vsel %vm268, %v275, 0.0
  %277 = vadd.xlane.f32.xlu0 %v276
  %v278 = vpop.xlane.xlu0 %277
  %v279 = vmul.f32 %v278, 8.0
  %v280 = vrcp.pop %v279
  %v281 = vmul.f32 %v275, %v280
  %v283 = vsel %vm102, %v281, 0
  %285 = vmatprep.subr.mxu0 0.0
  %286 = vmatpush1.msra.mxu0 %v257
  %287 = vmatprep.subr.mxu0 0.0
  %288 = vmatpush1.msra.mxu0 %v258
  %289 = vmatprep.subr.mxu0 0.0
  %290 = vmatpush1.msra.mxu0 0.0
  %291 = vmatprep.subr.mxu0 0.0
  %292 = vmatpush1.msra.mxu0 0.0
  %293 = vmatprep.subr.mxu0 0.0
  %294 = vmatpush1.msra.mxu0 0.0
  %295 = vmatprep.subr.mxu0 0.0
  %296 = vmatpush1.msra.mxu0 0.0
  %297 = vmatprep.subr.mxu0 0.0
  %298 = vmatpush1.msra.mxu0 0.0
  %299 = vmatprep.subr.mxu0 0.0
  %300 = vmatpush1.msra.mxu0 0.0
  %301 = vmatprep.subr.mxu0 0.0
  %302 = vmatpush1.msra.mxu0 0.0
  %303 = vmatprep.subr.mxu0 0.0
  %304 = vmatpush1.msra.mxu0 0.0
  %305 = vmatprep.subr.mxu0 0.0
  %306 = vmatpush1.msra.mxu0 0.0
  %307 = vmatprep.subr.mxu0 0.0
  %308 = vmatpush1.msra.mxu0 0.0
  %309 = vmatprep.subr.mxu0 0.0
  %310 = vmatpush1.msra.mxu0 0.0
  %311 = vmatprep.subr.mxu0 0.0
  %312 = vmatpush1.msra.mxu0 0.0
  %313 = vmatprep.subr.mxu0 0.0
  %314 = vmatpush1.msra.mxu0 0.0
  %315 = vmatprep.subr.mxu0 0.0
  %316 = vmatpush1.msra.mxu0 0.0
  %317 = vmatprep.subr.mxu0 0.0
  %318 = vmatpush1.msra.mxu0 0.0
  %319 = vmatprep.subr.mxu0 0.0
  %320 = vmatpush1.msra.mxu0 0.0
  %321 = vmatprep.subr.mxu0 0.0
  %322 = vmatpush1.msra.mxu0 0.0
  %323 = vmatprep.subr.mxu0 0.0
  %324 = vmatpush1.msra.mxu0 0.0
  %325 = vmatprep.subr.mxu0 0.0
  %326 = vmatpush1.msra.mxu0 0.0
  %327 = vmatprep.subr.mxu0 0.0
  %328 = vmatpush1.msra.mxu0 0.0
  %329 = vmatprep.subr.mxu0 0.0
  %330 = vmatpush1.msra.mxu0 0.0
  %331 = vmatprep.subr.mxu0 0.0
  %332 = vmatpush1.msra.mxu0 0.0
  %333 = vmatprep.subr.mxu0 0.0
  %334 = vmatpush1.msra.mxu0 0.0
  %335 = vmatprep.subr.mxu0 0.0
  %336 = vmatpush1.msra.mxu0 0.0
  %337 = vmatprep.subr.mxu0 0.0
  %338 = vmatpush1.msra.mxu0 0.0
  %339 = vmatprep.subr.mxu0 0.0
  %340 = vmatpush1.msra.mxu0 0.0
  %341 = vmatprep.subr.mxu0 0.0
  %342 = vmatpush1.msra.mxu0 0.0
  %343 = vmatprep.subr.mxu0 0.0
  %344 = vmatpush1.msra.mxu0 0.0
  %345 = vmatprep.subr.mxu0 0.0
  %346 = vmatpush1.msra.mxu0 0.0
  %347 = vmatprep.subr.mxu0 0.0
  %348 = vmatpush1.msra.mxu0 0.0
  %349 = vmatprep.mubr.f32.mxu0 0.0
  %350 = vmatmul.mubr.f32.gmra.mrb[0].mxu0 %v283
  %v351 = vpop.f32.mrb[0].mxu0
  %v352 = vadd.f32 0.0, %v351
  %v353 = vpop.f32.mrb[0].mxu0
  %354 = vdwg.mxu0
  %v356 = vrot.slane %v352, 1
  %357 = vrot.lane.b32.xlu0 %v356, 64
  %v358 = vpop.permute.xlu0 %357
  %vm360 = vcmask 523264
  %v361 = vsel %vm360, %v352, %v358
  %362 = vst [vmem:[%s5] sm:$0x1] %v361
  // Predicated region
  $region22: #{attention_basic.1} parent=0 // pred_check
    _
  $region23: #{attention_basic.1} parent=0 // pred_check_branch
    %364 = sbr.rel (0) target = $region25
  $region24: #{attention_basic.1} parent=0 // pred_region
    _
  $region25: #{attention_basic.1} parent=0 // pred_fallthru
    _
  // Predicated region
  $region26: #{attention_basic.1} parent=0 // pred_check
    _
  $region27: #{attention_basic.1} parent=0 // pred_check_branch
    %366 = sbr.rel (0) target = $region29
  $region28: #{attention_basic.1} parent=0 // pred_region
    _
  $region29: #{attention_basic.1} parent=0 // pred_fallthru
    _

</llo_original>
